<compile_context>
chip_gen: v7x
topology: tpu7x:2x2x1
jax: 0.10.0
libtpu: 0.0.40
codegen_flags: <defaults>
</compile_context>

<pallas_src>
import functools

import jax
import jax.numpy as jnp
from jax.experimental import pallas as pl
from jax.experimental.pallas import tpu as pltpu

LANE = 128


def _round_up(n, m):
    return ((n + m - 1) // m) * m


def _cdiv(a, b):
    return -(-a // b)


def _bf16_eltwise_ok():
    """bf16 VPU/EUP exists on v6e/v7x; keep f32 elsewhere (v4/v5e/v5p/unknown)."""
    try:
        kind = jax.devices()[0].device_kind.lower()
    except Exception:
        return False
    return ("v6" in kind) or ("v7" in kind)


def _value_kernel(x_ref, w1_ref, b1_ref, w2_ref, b2_ref, w3_ref, b3_ref, o_ref,
                  *, act_dtype):
    # Layer 1: (bm, D) @ (D, HP) on the MXU, f32 accumulation; tanh on VPU/EUP.
    x = x_ref[...]
    a1 = jnp.dot(x, w1_ref[...], preferred_element_type=jnp.float32) + b1_ref[...]
    h1 = jnp.tanh(a1.astype(act_dtype)).astype(jnp.bfloat16)

    # Layer 2: (bm, HP) @ (HP, HP) on the MXU.
    a2 = jnp.dot(h1, w2_ref[...], preferred_element_type=jnp.float32) + b2_ref[...]
    h2 = jnp.tanh(a2.astype(act_dtype)).astype(jnp.float32)

    # Value head (output width 1): VPU multiply by the broadcast w3 row + lane
    # reduction -> compact (bm, 1) result.  Padded hidden columns are exactly
    # zero in both h2 and w3, so the reduction is numerically identical to the
    # unpadded reference.
    v = jnp.sum(h2 * w3_ref[...], axis=-1, keepdims=True) + b3_ref[...]
    o_ref[...] = v.astype(o_ref.dtype)


def prepare_params(params):
    """Pad hidden dim to the 128-lane width, cast matmul weights to bf16 and
    transpose the value head into a broadcastable row.  Call this ONCE, outside
    the hot forward path (separate XLA ops otherwise re-run every call)."""
    w1, b1 = params["w1"], params["b1"]
    w2, b2 = params["w2"], params["b2"]
    w3, b3 = params["w3"], params["b3"]
    D, H = w1.shape
    HP = _round_up(H, LANE)

    w1p = jnp.zeros((D, HP), jnp.bfloat16).at[:, :H].set(w1.astype(jnp.bfloat16))
    b1p = jnp.zeros((1, HP), jnp.float32).at[:, :H].set(
        b1.reshape(1, H).astype(jnp.float32))
    w2p = jnp.zeros((HP, HP), jnp.bfloat16).at[:H, :H].set(w2.astype(jnp.bfloat16))
    b2p = jnp.zeros((1, HP), jnp.float32).at[:, :H].set(
        b2.reshape(1, H).astype(jnp.float32))
    # Value-head weight as an f32 row (used on the VPU, not the MXU).
    w3p = jnp.zeros((1, HP), jnp.float32).at[:, :H].set(
        w3.reshape(1, H).astype(jnp.float32))
    b3p = b3.reshape(1, 1).astype(jnp.float32)
    return {"w1": w1p, "b1": b1p, "w2": w2p, "b2": b2p, "w3": w3p, "b3": b3p}


def _choose_tiling(B, bm_max):
    """Batch tile size + grid length.  Tiny batches -> one tile; otherwise at
    least 2 tiles (keeps both v7x TensorCores busy) of up to bm_max rows."""
    Bp = _round_up(max(B, 1), 8)
    if Bp <= 512:
        return Bp, 1
    n = max(2, _cdiv(Bp, bm_max))
    bm = _round_up(_cdiv(Bp, n), 128)
    return bm, _cdiv(Bp, bm)


def value_forward(x, prepared, *, bm_max=2048):
    """x: (B, D) float32.  prepared: output of prepare_params()."""
    B, D = x.shape
    w1, b1 = prepared["w1"], prepared["b1"]
    w2, b2 = prepared["w2"], prepared["b2"]
    w3, b3 = prepared["w3"], prepared["b3"]
    assert w1.shape[0] == D, "input feature dim mismatch with prepared params"
    HP = w1.shape[1]

    bm, grid0 = _choose_tiling(B, bm_max)
    B_pad = bm * grid0

    x_bf16 = x.astype(jnp.bfloat16)
    if B_pad != B:
        x_bf16 = jnp.zeros((B_pad, D), jnp.bfloat16).at[:B].set(x_bf16)

    act_dtype = jnp.bfloat16 if _bf16_eltwise_ok() else jnp.float32
    kernel = functools.partial(_value_kernel, act_dtype=act_dtype)

    out = pl.pallas_call(
        kernel,
        out_shape=jax.ShapeDtypeStruct((B_pad, 1), jnp.float32),
        grid_spec=pltpu.PrefetchScalarGridSpec(
            num_scalar_prefetch=0,
            grid=(grid0,),
            in_specs=[
                pl.BlockSpec((bm, D), lambda i: (i, 0)),     # x: tiled over batch
                pl.BlockSpec((D, HP), lambda i: (0, 0)),     # w1 (resident)
                pl.BlockSpec((1, HP), lambda i: (0, 0)),     # b1
                pl.BlockSpec((HP, HP), lambda i: (0, 0)),    # w2 (resident)
                pl.BlockSpec((1, HP), lambda i: (0, 0)),     # b2
                pl.BlockSpec((1, HP), lambda i: (0, 0)),     # w3 row (f32)
                pl.BlockSpec((1, 1), lambda i: (0, 0)),      # b3 scalar
            ],
            out_specs=pl.BlockSpec((bm, 1), lambda i: (i, 0)),  # compact values
        ),
        compiler_params=pltpu.CompilerParams(
            dimension_semantics=("parallel",),
        ),
        cost_estimate=pl.CostEstimate(
            flops=2 * B_pad * (D * HP + HP * HP + HP),
            transcendentals=2 * B_pad * HP,
            bytes_accessed=B_pad * (2 * D + 4)
            + 2 * (D * HP + HP * HP) + 4 * (3 * HP + 1),
        ),
    )(x_bf16, w1, b1, w2, b2, w3, b3)

    return out[:B]


def init_params(key, num_inputs, hidden_size=64):
    """Deterministic init mirroring nn.Linear defaults (U(-1/sqrt(fan_in), ..))
    plus the module's value_head weight*0.1 / bias*0.0 tweak.
    Weights stored as (in_features, out_features)."""
    k1, k2, k3, k4, k5, k6 = jax.random.split(key, 6)

    def uinit(k, shape, fan_in):
        bound = 1.0 / jnp.sqrt(fan_in)
        return jax.random.uniform(k, shape, jnp.float32, -bound, bound)

    w1 = uinit(k1, (num_inputs, hidden_size), num_inputs)
    b1 = uinit(k2, (1, hidden_size), num_inputs)
    w2 = uinit(k3, (hidden_size, hidden_size), hidden_size)
    b2 = uinit(k4, (1, hidden_size), hidden_size)
    w3 = uinit(k5, (hidden_size, 1), hidden_size) * 0.1   # .weight.data.mul_(0.1)
    b3 = uinit(k6, (1, 1), hidden_size) * 0.0             # .bias.data.mul_(0.0)
    return {"w1": w1, "b1": b1, "w2": w2, "b2": b2, "w3": w3, "b3": b3}


def value_ref(x, p):
    h1 = jnp.tanh(x @ p["w1"] + p["b1"])
    h2 = jnp.tanh(h1 @ p["w2"] + p["b2"])
    return h2 @ p["w3"] + p["b3"]


if __name__ == "__main__":
    key = jax.random.PRNGKey(0)
    kx, kp, kx2 = jax.random.split(key, 3)

    D, H = 32, 64                      # num_inputs, hidden_size
    params = init_params(kp, D, H)
    prepared = prepare_params(params)  # hoisted out of the hot path

    fwd = jax.jit(lambda xx: value_forward(xx, prepared))

    # Small batch: single tile.
    x_small = jax.random.normal(kx, (8, D), jnp.float32)
    out_small = jax.block_until_ready(fwd(x_small))
    ref_small = value_ref(x_small, params)
    assert out_small.shape == (8, 1)
    assert bool(jnp.all(jnp.isfinite(out_small)))
    assert jnp.allclose(out_small, ref_small, atol=3e-2, rtol=3e-2), (
        f"max abs err {jnp.max(jnp.abs(out_small - ref_small))}")

    # Larger batch: exercises multi-tile grid + batch padding paths.
    x_big = jax.random.normal(kx2, (600, D), jnp.float32)
    out_big = jax.block_until_ready(fwd(x_big))
    ref_big = value_ref(x_big, params)
    assert out_big.shape == (600, 1)
    assert bool(jnp.all(jnp.isfinite(out_big)))
    assert jnp.allclose(out_big, ref_big, atol=3e-2, rtol=3e-2), (
        f"max abs err {jnp.max(jnp.abs(out_big - ref_big))}")

    print("KERNEL_OK")
</pallas_src>

<mosaic_0001>
module attributes {stable_mosaic.version = 11 : i64} {
  func.func @_value_kernel(%arg0: i32, %arg1: memref<8x32xbf16, #tpu.memory_space<vmem>>, %arg2: memref<32x128xbf16, #tpu.memory_space<vmem>>, %arg3: memref<1x128xf32, #tpu.memory_space<vmem>>, %arg4: memref<128x128xbf16, #tpu.memory_space<vmem>>, %arg5: memref<1x128xf32, #tpu.memory_space<vmem>>, %arg6: memref<1x128xf32, #tpu.memory_space<vmem>>, %arg7: memref<1x1xf32, #tpu.memory_space<vmem>>, %arg8: memref<8x1xf32, #tpu.memory_space<vmem>>) attributes {dimension_semantics = [#tpu.dimension_semantics<parallel>], iteration_bounds = array<i64: 1>, scalar_prefetch = 0 : i64, scratch_operands = 0 : i64, tpu.core_type = #tpu.core_type<tc>, window_params = [{transform_indices = @transform_0, window_bounds = array<i64: 8, 32>}, {pipeline_mode = #tpu.pipeline_mode<synchronous>, transform_indices = @transform_1, window_bounds = array<i64: 32, 128>}, {pipeline_mode = #tpu.pipeline_mode<synchronous>, transform_indices = @transform_2, window_bounds = array<i64: 1, 128>}, {pipeline_mode = #tpu.pipeline_mode<synchronous>, transform_indices = @transform_3, window_bounds = array<i64: 128, 128>}, {pipeline_mode = #tpu.pipeline_mode<synchronous>, transform_indices = @transform_4, window_bounds = array<i64: 1, 128>}, {pipeline_mode = #tpu.pipeline_mode<synchronous>, transform_indices = @transform_5, window_bounds = array<i64: 1, 128>}, {pipeline_mode = #tpu.pipeline_mode<synchronous>, transform_indices = @transform_6, window_bounds = array<i64: 1, 1>}, {transform_indices = @transform_7, window_bounds = array<i64: 8, 1>}]} {
    %c0 = arith.constant 0 : index
    %c0_0 = arith.constant 0 : index
    %0 = vector.load %arg1[%c0, %c0_0] : memref<8x32xbf16, #tpu.memory_space<vmem>>, vector<8x32xbf16>
    %c0_1 = arith.constant 0 : index
    %c0_2 = arith.constant 0 : index
    %1 = vector.load %arg2[%c0_1, %c0_2] : memref<32x128xbf16, #tpu.memory_space<vmem>>, vector<32x128xbf16>
    %cst = arith.constant dense<0.000000e+00> : vector<8x128xf32>
    %2 = tpu.matmul %0, %1, %cst {dimension_numbers = #tpu.dot_dimension_numbers<[1], [0], [0], [1], [0, 0, 1, 1], [], []>} : vector<8x32xbf16>, vector<32x128xbf16>, vector<8x128xf32> -> vector<8x128xf32>
    %c0_3 = arith.constant 0 : index
    %c0_4 = arith.constant 0 : index
    %3 = vector.load %arg3[%c0_3, %c0_4] : memref<1x128xf32, #tpu.memory_space<vmem>>, vector<1x128xf32>
    %4 = vector.broadcast %3 : vector<1x128xf32> to vector<8x128xf32>
    %5 = arith.addf %2, %4 : vector<8x128xf32>
    %6 = math.tanh %5 : vector<8x128xf32>
    %7 = arith.truncf %6 : vector<8x128xf32> to vector<8x128xbf16>
    %c0_5 = arith.constant 0 : index
    %c0_6 = arith.constant 0 : index
    %8 = vector.load %arg4[%c0_5, %c0_6] : memref<128x128xbf16, #tpu.memory_space<vmem>>, vector<128x128xbf16>
    %cst_7 = arith.constant dense<0.000000e+00> : vector<8x128xf32>
    %9 = tpu.matmul %7, %8, %cst_7 {dimension_numbers = #tpu.dot_dimension_numbers<[1], [0], [0], [1], [0, 0, 1, 1], [], []>} : vector<8x128xbf16>, vector<128x128xbf16>, vector<8x128xf32> -> vector<8x128xf32>
    %c0_8 = arith.constant 0 : index
    %c0_9 = arith.constant 0 : index
    %10 = vector.load %arg5[%c0_8, %c0_9] : memref<1x128xf32, #tpu.memory_space<vmem>>, vector<1x128xf32>
    %11 = vector.broadcast %10 : vector<1x128xf32> to vector<8x128xf32>
    %12 = arith.addf %9, %11 : vector<8x128xf32>
    %13 = math.tanh %12 : vector<8x128xf32>
    %c0_10 = arith.constant 0 : index
    %c0_11 = arith.constant 0 : index
    %14 = vector.load %arg6[%c0_10, %c0_11] : memref<1x128xf32, #tpu.memory_space<vmem>>, vector<1x128xf32>
    %15 = vector.broadcast %14 : vector<1x128xf32> to vector<8x128xf32>
    %16 = arith.mulf %13, %15 : vector<8x128xf32>
    %cst_12 = arith.constant dense<0.000000e+00> : vector<8xf32>
    %17 = vector.multi_reduction <add>, %16, %cst_12 [1] : vector<8x128xf32> to vector<8xf32>
    %18 = vector.shape_cast %17 : vector<8xf32> to vector<8x1xf32>
    %c0_13 = arith.constant 0 : index
    %c0_14 = arith.constant 0 : index
    %19 = vector.load %arg7[%c0_13, %c0_14] : memref<1x1xf32, #tpu.memory_space<vmem>>, vector<1x1xf32>
    %20 = vector.broadcast %19 : vector<1x1xf32> to vector<8x1xf32>
    %21 = arith.addf %18, %20 : vector<8x1xf32>
    %c0_15 = arith.constant 0 : index
    %c0_16 = arith.constant 0 : index
    %22 = vector.load %arg8[%c0_15, %c0_16] : memref<8x1xf32, #tpu.memory_space<vmem>>, vector<8x1xf32>
    tpu.vector_store %arg8[%c0_15, %c0_16], %21 {strides = array<i32>} : memref<8x1xf32, #tpu.memory_space<vmem>>, vector<8x1xf32>,
    return
  }
  func.func @transform_0(%arg0: i32) -> (i32, i32) {
    %c0_i32 = arith.constant 0 : i32
    %c0_i32_0 = arith.constant 0 : i32
    return %arg0, %c0_i32 : i32, i32
  }
  func.func @transform_1(%arg0: i32) -> (i32, i32) {
    %c0_i32 = arith.constant 0 : i32
    %c0_i32_0 = arith.constant 0 : i32
    %c0_i32_1 = arith.constant 0 : i32
    return %c0_i32, %c0_i32_0 : i32, i32
  }
  func.func @transform_2(%arg0: i32) -> (i32, i32) {
    %c0_i32 = arith.constant 0 : i32
    %c0_i32_0 = arith.constant 0 : i32
    %c0_i32_1 = arith.constant 0 : i32
    return %c0_i32, %c0_i32_0 : i32, i32
  }
  func.func @transform_3(%arg0: i32) -> (i32, i32) {
    %c0_i32 = arith.constant 0 : i32
    %c0_i32_0 = arith.constant 0 : i32
    %c0_i32_1 = arith.constant 0 : i32
    return %c0_i32, %c0_i32_0 : i32, i32
  }
  func.func @transform_4(%arg0: i32) -> (i32, i32) {
    %c0_i32 = arith.constant 0 : i32
    %c0_i32_0 = arith.constant 0 : i32
    %c0_i32_1 = arith.constant 0 : i32
    return %c0_i32, %c0_i32_0 : i32, i32
  }
  func.func @transform_5(%arg0: i32) -> (i32, i32) {
    %c0_i32 = arith.constant 0 : i32
    %c0_i32_0 = arith.constant 0 : i32
    %c0_i32_1 = arith.constant 0 : i32
    return %c0_i32, %c0_i32_0 : i32, i32
  }
  func.func @transform_6(%arg0: i32) -> (i32, i32) {
    %c0_i32 = arith.constant 0 : i32
    %c0_i32_0 = arith.constant 0 : i32
    %c0_i32_1 = arith.constant 0 : i32
    return %c0_i32, %c0_i32_0 : i32, i32
  }
  func.func @transform_7(%arg0: i32) -> (i32, i32) {
    %c0_i32 = arith.constant 0 : i32
    %c0_i32_0 = arith.constant 0 : i32
    return %arg0, %c0_i32 : i32, i32
  }
}

</mosaic_0001>

<llo_original>
// kernel: _lambda_.1
$region0: #{_lambda_.1}
  #allocation0 [shape = 'u32[]', space=smem, size = 0x4, offset = 0x4, fixed_abs, tag = 'smem constant byte address 0x4 - core index']
  #allocation1 [shape = 'u32[144,128]{1,0:T(1,128)}', space=vmem, size = 0x12000, scoped, tag = 'internal scratch']
  #allocation2 [shape = 'f32[1,1]{1,0:T(1,128)S(1)}', space=vmem, size = 0x200, scoped, tag = 'scoped memory for _lambda_.1']
  %s0 = inlined_call_operand.vmem [shape: bf16[8,32], index: 0, kind: input, shape index: {}]
  %s1 = inlined_call_operand.vmem [shape: bf16[32,128], index: 1, kind: input, shape index: {}]
  %s2 = inlined_call_operand.vmem [shape: f32[1,128], index: 2, kind: input, shape index: {}]
  %s3 = inlined_call_operand.hbm [shape: bf16[128,128], index: 3, kind: input, shape index: {}]
  %s4 = inlined_call_operand.vmem [shape: f32[1,128], index: 4, kind: input, shape index: {}]
  %s5 = inlined_call_operand.vmem [shape: f32[1,128], index: 5, kind: input, shape index: {}]
  %s6 = inlined_call_operand.<no memory space> [shape: f32[1,1], index: 6, kind: input, shape index: {}]
  %s7 = inlined_call_operand.vmem [shape: f32[8,1], index: 7, kind: output, shape index: {}]
  %s8 = sld [smem:[#allocation0]]
  $region42: #{_lambda_.1} parent=0
    _
  %s10 = ssub.s32 1, %s8
  %s11 = scalar_select 0, %s10, %s8
  %v12 = vstv %s6
  %13 = vst [vmem:[#allocation2] sm:$0x1] %v12
  $region1: #{_lambda_.1} parent=0
    #allocation3 [shape = 'u8[32768]{0}', space=vmem, size = 0x8000, scoped, tag = 'input window, operand 3, single buffered']
    #allocation4 [shape = 's32[1]{0}', space=sflag, size = 0x4, scoped, tag = 'scoped memory for _lambda_.1']
    %14 = vsyncpa [#allocation4], 0
    // Predicated region
    $region2: #{_lambda_.1} parent=1 // pred_check
      _
    $region3: #{_lambda_.1} parent=1 // pred_check_branch
      %16 = sbr.rel (0) target = $region5
    $region4: #{_lambda_.1} parent=1 // pred_region
      _
    $region5: #{_lambda_.1} parent=1 // pred_fallthru
      _
    // Predicated region
    $region6: #{_lambda_.1} parent=1 // pred_check
      _
    $region7: #{_lambda_.1} parent=1 // pred_check_branch
      %18 = sbr.rel (0) target = $region9
    $region8: #{_lambda_.1} parent=1 // pred_region
      _
    $region9: #{_lambda_.1} parent=1 // pred_fallthru
      _
    // Predicated region
    $region10: #{_lambda_.1} parent=1 // pred_check
      _
    $region11: #{_lambda_.1} parent=1 // pred_check_branch
      %20 = sbr.rel (0) target = $region13
    $region12: #{_lambda_.1} parent=1 // pred_region
      _
    $region13: #{_lambda_.1} parent=1 // pred_fallthru
      _
    // Predicated region
    $region14: #{_lambda_.1} parent=1 // pred_check
      _
    $region15: #{_lambda_.1} parent=1 // pred_check_branch
      %22 = sbr.rel (0) target = $region17
    $region16: #{_lambda_.1} parent=1 // pred_region
      %s24 = ssub.s32 1024, 1024
      %25 = vsyncadd [#allocation4], %s24
      %s26 = sshll.u32 [#allocation3], 4
      %s27 = int_to_ptr.vmem [resolvable:$true] %s26
      %32 = dma.hbm_to_vmem [thread:$0]  %s3, 1024, %s27, [#allocation4], 64, 64, 4
    $region17: #{_lambda_.1} parent=1 // pred_fallthru
      _
    // Predicated region
    $region18: #{_lambda_.1} parent=1 // pred_check
      _
    $region19: #{_lambda_.1} parent=1 // pred_check_branch
      %34 = sbr.rel (0) target = $region21
    $region20: #{_lambda_.1} parent=1 // pred_region
      _
    $region21: #{_lambda_.1} parent=1 // pred_fallthru
      _
    // Predicated region
    $region22: #{_lambda_.1} parent=1 // pred_check
      _
    $region23: #{_lambda_.1} parent=1 // pred_check_branch
      %36 = sbr.rel (0) target = $region25
    $region24: #{_lambda_.1} parent=1 // pred_region
      _
    $region25: #{_lambda_.1} parent=1 // pred_fallthru
      _
    // Predicated region
    $region26: #{_lambda_.1} parent=1 // pred_check
      _
    $region27: #{_lambda_.1} parent=1 // pred_check_branch
      %38 = sbr.rel (0) target = $region29
    $region28: #{_lambda_.1} parent=1 // pred_region
      _
    $region29: #{_lambda_.1} parent=1 // pred_fallthru
      _
    // Predicated region
    $region30: #{_lambda_.1} parent=1 // pred_check
      _
    $region31: #{_lambda_.1} parent=1 // pred_check_branch
      %40 = sbr.rel (0) target = $region33
    $region32: #{_lambda_.1} parent=1 // pred_region
      %41 = dma.done [#allocation4], 1024
    $region33: #{_lambda_.1} parent=1 // pred_fallthru
      _
    %v43 = vld [vmem:[%s0] sm:$0xf]
    %v44 = vld [vmem:[%s1] sm:$0xf]
    %v45 = vld [vmem:[%s1 + $0x4] sm:$0xf]
    %v46 = vld [vmem:[%s1 + $0x8] sm:$0xf]
    %v47 = vld [vmem:[%s1 + $0xc] sm:$0xf]
    %v48 = vld [vmem:[%s2] sm:$0x1]
    %v50 = vlaneseq
    %v51 = vshrl.u32 %v50, 7
    %v52 = vsub.s32 0, %v51
    %v53 = vrot.slane %v48, %v52
    %v59 = vunpack.c.l.b16 %v44
    %v60 = vunpack.c.l.b16 %v45
    %v61 = vunpack.c.l.b16 %v46
    %v62 = vunpack.c.l.b16 %v47
    %v63 = vpack.c.b16 %v60, %v59
    %v64 = vpack.c.b16 %v62, %v61
    %vm67 = vcmask 261120
    %v69 = vsel %vm67, %v43, 0
    %71 = vmatprep.subr.bf16.mxu0 0
    %72 = vmatpush1.bf16.msra.mxu0 %v63
    %73 = vmatprep.subr.bf16.mxu0 0
    %74 = vmatpush1.bf16.msra.mxu0 %v64
    %75 = vmatprep.subr.bf16.mxu0 0
    %76 = vmatpush1.bf16.msra.mxu0 0
    %77 = vmatprep.subr.bf16.mxu0 0
    %78 = vmatpush1.bf16.msra.mxu0 0
    %79 = vmatprep.subr.bf16.mxu0 0
    %80 = vmatpush1.bf16.msra.mxu0 0
    %81 = vmatprep.subr.bf16.mxu0 0
    %82 = vmatpush1.bf16.msra.mxu0 0
    %83 = vmatprep.subr.bf16.mxu0 0
    %84 = vmatpush1.bf16.msra.mxu0 0
    %85 = vmatprep.subr.bf16.mxu0 0
    %86 = vmatpush1.bf16.msra.mxu0 0
    %87 = vmatprep.subr.bf16.mxu0 0
    %88 = vmatpush1.bf16.msra.mxu0 0
    %89 = vmatprep.subr.bf16.mxu0 0
    %90 = vmatpush1.bf16.msra.mxu0 0
    %91 = vmatprep.subr.bf16.mxu0 0
    %92 = vmatpush1.bf16.msra.mxu0 0
    %93 = vmatprep.subr.bf16.mxu0 0
    %94 = vmatpush1.bf16.msra.mxu0 0
    %95 = vmatprep.subr.bf16.mxu0 0
    %96 = vmatpush1.bf16.msra.mxu0 0
    %97 = vmatprep.subr.bf16.mxu0 0
    %98 = vmatpush1.bf16.msra.mxu0 0
    %99 = vmatprep.subr.bf16.mxu0 0
    %100 = vmatpush1.bf16.msra.mxu0 0
    %101 = vmatprep.subr.bf16.mxu0 0
    %102 = vmatpush1.bf16.msra.mxu0 0
    %103 = vmatprep.mubr.bf16.mxu0 0
    %104 = vmatmul.mubr.bf16.gmra.mrb[0].mxu0 %v69
    %v105 = vpop.f32.mrb[0].mxu0
    %v106 = vadd.f32 %v53, %v105
    %v107 = vpop.f32.mrb[0].mxu0
    %v108 = vpop.f32.mrb[0].mxu0
    %v109 = vpop.f32.mrb[0].mxu0
    %110 = vdwg.mxu0
    %v111 = vtanh.pop %v106
    %v112 = vpack.c.bf16 %v111, %v111
    %v113 = vld [vmem:[#allocation3] sm:$0xf]
    %v114 = vld [vmem:[#allocation3 + $0x4] sm:$0xf]
    %v115 = vld [vmem:[#allocation3 + $0x8] sm:$0xf]
    %v116 = vld [vmem:[#allocation3 + $0xc] sm:$0xf]
    %v117 = vld [vmem:[#allocation3 + $0x10] sm:$0xf]
    %v118 = vld [vmem:[#allocation3 + $0x14] sm:$0xf]
    %v119 = vld [vmem:[#allocation3 + $0x18] sm:$0xf]
    %v120 = vld [vmem:[#allocation3 + $0x1c] sm:$0xf]
    %v121 = vld [vmem:[#allocation3 + $0x20] sm:$0xf]
    %v122 = vld [vmem:[#allocation3 + $0x24] sm:$0xf]
    %v123 = vld [vmem:[#allocation3 + $0x28] sm:$0xf]
    %v124 = vld [vmem:[#allocation3 + $0x2c] sm:$0xf]
    %v125 = vld [vmem:[#allocation3 + $0x30] sm:$0xf]
    %v126 = vld [vmem:[#allocation3 + $0x34] sm:$0xf]
    %v127 = vld [vmem:[#allocation3 + $0x38] sm:$0xf]
    %v128 = vld [vmem:[#allocation3 + $0x3c] sm:$0xf]
    %v129 = vld [vmem:[%s4] sm:$0x1]
    %v131 = vlaneseq
    %v132 = vshrl.u32 %v131, 7
    %v133 = vsub.s32 0, %v132
    %v134 = vrot.slane %v129, %v133
    %v152 = vunpack.c.l.b16 %v113
    %v153 = vunpack.c.l.b16 %v114
    %v154 = vunpack.c.l.b16 %v115
    %v155 = vunpack.c.l.b16 %v116
    %v156 = vunpack.c.l.b16 %v117
    %v157 = vunpack.c.l.b16 %v118
    %v158 = vunpack.c.l.b16 %v119
    %v159 = vunpack.c.l.b16 %v120
    %v160 = vunpack.c.l.b16 %v121
    %v161 = vunpack.c.l.b16 %v122
    %v162 = vunpack.c.l.b16 %v123
    %v163 = vunpack.c.l.b16 %v124
    %v164 = vunpack.c.l.b16 %v125
    %v165 = vunpack.c.l.b16 %v126
    %v166 = vunpack.c.l.b16 %v127
    %v167 = vunpack.c.l.b16 %v128
    %v168 = vpack.c.b16 %v153, %v152
    %v169 = vpack.c.b16 %v155, %v154
    %v170 = vpack.c.b16 %v157, %v156
    %v171 = vpack.c.b16 %v159, %v158
    %v172 = vpack.c.b16 %v161, %v160
    %v173 = vpack.c.b16 %v163, %v162
    %v174 = vpack.c.b16 %v165, %v164
    %v175 = vpack.c.b16 %v167, %v166
    %184 = vmatprep.subr.bf16.mxu0 0
    %185 = vmatpush1.bf16.msra.mxu0 %v168
    %186 = vmatprep.subr.bf16.mxu0 0
    %187 = vmatpush1.bf16.msra.mxu0 %v169
    %188 = vmatprep.subr.bf16.mxu0 0
    %189 = vmatpush1.bf16.msra.mxu0 %v170
    %190 = vmatprep.subr.bf16.mxu0 0
    %191 = vmatpush1.bf16.msra.mxu0 %v171
    %192 = vmatprep.subr.bf16.mxu0 0
    %193 = vmatpush1.bf16.msra.mxu0 %v172
    %194 = vmatprep.subr.bf16.mxu0 0
    %195 = vmatpush1.bf16.msra.mxu0 %v173
    %196 = vmatprep.subr.bf16.mxu0 0
    %197 = vmatpush1.bf16.msra.mxu0 %v174
    %198 = vmatprep.subr.bf16.mxu0 0
    %199 = vmatpush1.bf16.msra.mxu0 %v175
    %200 = vmatprep.subr.bf16.mxu0 0
    %201 = vmatpush1.bf16.msra.mxu0 0
    %202 = vmatprep.subr.bf16.mxu0 0
    %203 = vmatpush1.bf16.msra.mxu0 0
    %204 = vmatprep.subr.bf16.mxu0 0
    %205 = vmatpush1.bf16.msra.mxu0 0
    %206 = vmatprep.subr.bf16.mxu0 0
    %207 = vmatpush1.bf16.msra.mxu0 0
    %208 = vmatprep.subr.bf16.mxu0 0
    %209 = vmatpush1.bf16.msra.mxu0 0
    %210 = vmatprep.subr.bf16.mxu0 0
    %211 = vmatpush1.bf16.msra.mxu0 0
    %212 = vmatprep.subr.bf16.mxu0 0
    %213 = vmatpush1.bf16.msra.mxu0 0
    %214 = vmatprep.subr.bf16.mxu0 0
    %215 = vmatpush1.bf16.msra.mxu0 0
    %216 = vmatprep.mubr.bf16.mxu0 0
    %217 = vmatmul.mubr.bf16.gmra.mrb[0].mxu0 %v112
    %v218 = vpop.f32.mrb[0].mxu0
    %v219 = vadd.f32 %v134, %v218
    %v220 = vpop.f32.mrb[0].mxu0
    %v221 = vpop.f32.mrb[0].mxu0
    %v222 = vpop.f32.mrb[0].mxu0
    %223 = vdwg.mxu0
    %v224 = vtanh.pop %v219
    %v225 = vld [vmem:[%s5] sm:$0x1]
    %v227 = vlaneseq
    %v228 = vshrl.u32 %v227, 7
    %v229 = vsub.s32 0, %v228
    %v230 = vrot.slane %v225, %v229
    %v232 = vmul.f32 %v224, %v230
    %233 = vadd.xlane.f32.xlu0 %v232
    %v234 = vpop.xlane.xlu0 %233
    %v235 = vld [vmem:[#allocation2] sm:$0x1]
    %v237 = vlaneseq
    %v238 = vshrl.u32 %v237, 7
    %v239 = vsub.s32 0, %v238
    %v240 = vrot.slane %v235, %v239
    %v242 = vadd.f32 %v234, %v240
    %vm243 = vcmask 7168
    %244 = vst.msk [vmem:[%s7] sm:$0xff] %vm243, %v242
    // Predicated region
    $region34: #{_lambda_.1} parent=1 // pred_check
      _
    $region35: #{_lambda_.1} parent=1 // pred_check_branch
      %246 = sbr.rel (0) target = $region37
    $region36: #{_lambda_.1} parent=1 // pred_region
      _
    $region37: #{_lambda_.1} parent=1 // pred_fallthru
      _
    // Predicated region
    $region38: #{_lambda_.1} parent=1 // pred_check
      _
    $region39: #{_lambda_.1} parent=1 // pred_check_branch
      %248 = sbr.rel (0) target = $region41
    $region40: #{_lambda_.1} parent=1 // pred_region
      _
    $region41: #{_lambda_.1} parent=1 // pred_fallthru
      _
    %249 = vsyncpa [#allocation4], 1

</llo_original>
